<compile_context>
chip_gen: v5e
topology: v5e:2x2
jax: 0.10.0
libtpu: 0.0.40
codegen_flags: <defaults>
</compile_context>

<pallas_src>
import functools

import jax
import jax.numpy as jnp
from jax.experimental import pallas as pl
from jax.experimental.pallas import tpu as pltpu


def _hardswish6(v):
    # 6 * hardswish(v); the 1/6 is folded into the next linear layer's weights.
    return v * jnp.clip(v + 3.0, 0.0, 6.0)


def _inverted_residual_kernel(x_ref, w1_ref, b1_ref, wd_ref, bd_ref, mask_ref,
                              sw1_ref, sb1_ref, w23_ref, b23_ref, o_ref, *, W, K):
    L = x_ref.shape[-1]                 # Nb * H * W lanes
    P = K // 2

    # ---- 1x1 expansion conv (BN folded) + hardswish(x6).  MXU: (Cexp,Cin)@(Cin,L). ----
    y = jnp.dot(w1_ref[...], x_ref[0], preferred_element_type=jnp.float32)
    y = _hardswish6(y + b1_ref[...])                              # (Cexp, L) f32

    # ---- KxK depthwise conv, stride 1, SAME (BN + 1/6 folded into wd) + hardswish(x6).
    # Each tap = one lane roll (XLU) + precomputed-mask multiply + FMA (VPU), f32.
    # Masks are built in the wrapper (no div/mod or compares here) and also kill
    # cross-image bleed from the rolls over the batched lane axis.
    wd_all = wd_ref[...]                                          # (Cexp, K*K) f32
    masks = mask_ref[...]                                         # (K*K, L)    f32
    acc = jnp.zeros_like(y)
    for dh in range(-P, P + 1):
        for dw in range(-P, P + 1):
            t = (dh + P) * K + (dw + P)
            s = dh * W + dw                                       # flat lane offset
            src = y if s == 0 else pltpu.roll(y, (-s) % L, axis=1)  # src[i] = y[i + s]
            if not (dh == 0 and dw == 0):
                src = src * masks[t:t + 1, :]
            acc = acc + src * wd_all[:, t:t + 1]
    y = _hardswish6(acc + bd_ref[...])                            # (Cexp, L) f32

    # ---- SqueezeExcitation as written in the module (fc1 -> ReLU -> fc2), with fc2
    # folded into the Identity-activated 1x1 projection conv. ----
    z = jnp.dot(sw1_ref[...], y.astype(jnp.bfloat16),
                preferred_element_type=jnp.float32) + sb1_ref[...]    # (Cmid, L)
    z = jnp.maximum(z, 0.0)
    out = jnp.dot(w23_ref[...], z.astype(jnp.bfloat16),
                  preferred_element_type=jnp.float32) + b23_ref[...]  # (Cout, L)
    o_ref[0] = out.astype(o_ref.dtype)


def _tap_masks(H, W, K):
    """Per-image (K*K, H*W) validity masks for the depthwise taps (f32 0/1)."""
    P = K // 2
    hh = jnp.arange(H * W, dtype=jnp.int32) // W
    ww = jnp.arange(H * W, dtype=jnp.int32) % W
    rows = []
    for dh in range(-P, P + 1):
        for dw in range(-P, P + 1):
            valid = (hh + dh >= 0) & (hh + dh < H) & (ww + dw >= 0) & (ww + dw < W)
            rows.append(valid.astype(jnp.float32))
    return jnp.stack(rows)


def _pick_nb(N, per_img_bytes, vmem_budget_bytes=6 << 20):
    """Images per grid step: largest divisor of N within a conservative VMEM budget,
    keeping >= 2 grid steps when N >= 2 so v7x's two TensorCores both get work."""
    cap = max(1, int(vmem_budget_bytes // max(per_img_bytes, 1)))
    if N >= 2:
        cap = min(cap, N // 2)
    cap = max(1, min(cap, N))
    nb = 1
    for d in range(1, cap + 1):
        if N % d == 0:
            nb = d
    return nb


@jax.jit
def inverted_residual(x_nchw, params):
    """x_nchw: (N, Cin, H, W) float32.  Returns (N, Cout, H, W) float32."""
    (w1, b1, wd, bd, sw1, sb1, sw2, sb2, w3, b3) = params
    N, Cin, H, W = x_nchw.shape
    Cexp = w1.shape[1]
    Cmid = sw1.shape[1]
    Cout = w3.shape[1]
    K = wd.shape[0]
    S = H * W

    # Rough per-image in-kernel footprint (f32 intermediates dominate) -> pick Nb.
    per_img = S * (2 * Cin + 4 * Cout + 16 * Cexp + 4 * K * K)
    Nb = _pick_nb(N, per_img)
    G = N // Nb
    L = Nb * S

    # One-time tiny weight re-orientations / folds (channels on sublanes, spatial on
    # lanes; hardswish 1/6 folded into wd and sw1; SE fc2 folded into the projection).
    w1t = w1.T.astype(jnp.bfloat16)                      # (Cexp, Cin)
    b1c = b1.T                                           # (Cexp, 1)
    wdt = wd.reshape(K * K, Cexp).T * (1.0 / 6.0)        # (Cexp, K*K)
    bdc = bd.T                                           # (Cexp, 1)
    sw1t = (sw1 * (1.0 / 6.0)).T.astype(jnp.bfloat16)    # (Cmid, Cexp)
    sb1c = sb1.T                                         # (Cmid, 1)
    w23 = (sw2 @ w3).T.astype(jnp.bfloat16)              # (Cout, Cmid)
    b23 = (sb2 @ w3 + b3).T                              # (Cout, 1)
    masks = jnp.tile(_tap_masks(H, W, K), (1, Nb))       # (K*K, L)

    # (N, Cin, H, W) -> (G, Cin, Nb*S) bf16: images concatenated on the lane axis.
    # Free collapse for Nb == 1; a one-time relayout otherwise.
    x = (x_nchw.reshape(G, Nb, Cin, S)
               .transpose(0, 2, 1, 3)
               .reshape(G, Cin, L)
               .astype(jnp.bfloat16))

    kernel = functools.partial(_inverted_residual_kernel, W=W, K=K)

    out = pl.pallas_call(
        kernel,
        out_shape=jax.ShapeDtypeStruct((G, Cout, L), jnp.float32),
        grid_spec=pltpu.PrefetchScalarGridSpec(
            num_scalar_prefetch=0,
            grid=(G,),
            in_specs=[
                pl.BlockSpec((1, Cin, L), lambda g: (g, 0, 0)),
                pl.BlockSpec((Cexp, Cin), lambda g: (0, 0)),
                pl.BlockSpec((Cexp, 1), lambda g: (0, 0)),
                pl.BlockSpec((Cexp, K * K), lambda g: (0, 0)),
                pl.BlockSpec((Cexp, 1), lambda g: (0, 0)),
                pl.BlockSpec((K * K, L), lambda g: (0, 0)),
                pl.BlockSpec((Cmid, Cexp), lambda g: (0, 0)),
                pl.BlockSpec((Cmid, 1), lambda g: (0, 0)),
                pl.BlockSpec((Cout, Cmid), lambda g: (0, 0)),
                pl.BlockSpec((Cout, 1), lambda g: (0, 0)),
            ],
            out_specs=pl.BlockSpec((1, Cout, L), lambda g: (g, 0, 0)),
        ),
        compiler_params=pltpu.CompilerParams(dimension_semantics=("parallel",)),
    )(x, w1t, b1c, wdt, bdc, masks, sw1t, sb1c, w23, b23)

    # (G, Cout, Nb*S) -> (N, Cout, H, W)
    return (out.reshape(G, Cout, Nb, H, W)
               .transpose(0, 2, 1, 3, 4)
               .reshape(N, Cout, H, W))


# ---------------- deterministic synthetic parameters (BN folded in) ----------------

def _conv1x1_bn_fold(key, cin, cout, eps=1e-5):
    k1, k2, k3, k4, k5 = jax.random.split(key, 5)
    w = 0.1 * jax.random.normal(k1, (cin, cout), jnp.float32)
    gamma = 1.0 + 0.1 * jax.random.normal(k2, (cout,), jnp.float32)
    beta = 0.1 * jax.random.normal(k3, (cout,), jnp.float32)
    mean = 0.1 * jax.random.normal(k4, (cout,), jnp.float32)
    var = jnp.abs(jax.random.normal(k5, (cout,), jnp.float32)) + 0.5
    scale = gamma / jnp.sqrt(var + eps)
    return w * scale[None, :], (beta - mean * scale)[None, :]


def _dwconv_bn_fold(key, c, K, eps=1e-5):
    k1, k2, k3, k4, k5 = jax.random.split(key, 5)
    w = 0.1 * jax.random.normal(k1, (K, K, c), jnp.float32)
    gamma = 1.0 + 0.1 * jax.random.normal(k2, (c,), jnp.float32)
    beta = 0.1 * jax.random.normal(k3, (c,), jnp.float32)
    mean = 0.1 * jax.random.normal(k4, (c,), jnp.float32)
    var = jnp.abs(jax.random.normal(k5, (c,), jnp.float32)) + 0.5
    scale = gamma / jnp.sqrt(var + eps)
    return w * scale[None, None, :], (beta - mean * scale)[None, :]


def make_params(key, cin, cexp, cout, K):
    cmid = int(cexp * 0.25)
    ks = jax.random.split(key, 6)
    w1, b1 = _conv1x1_bn_fold(ks[0], cin, cexp)
    wd, bd = _dwconv_bn_fold(ks[1], cexp, K)
    sw1 = 0.1 * jax.random.normal(ks[2], (cexp, cmid), jnp.float32)
    sb1 = 0.05 * jax.random.normal(ks[3], (1, cmid), jnp.float32)
    sw2 = 0.1 * jax.random.normal(ks[4], (cmid, cexp), jnp.float32)
    sb2 = 0.05 * jax.random.normal(ks[5], (1, cexp), jnp.float32)
    w3, b3 = _conv1x1_bn_fold(jax.random.fold_in(key, 99), cexp, cout)
    return (w1, b1, wd, bd, sw1, sb1, sw2, sb2, w3, b3)


# ---------------- pure-JAX reference for correctness checking ----------------

def _hardswish(x):
    return x * jnp.clip(x + 3.0, 0.0, 6.0) * (1.0 / 6.0)


def reference(x_nchw, params):
    (w1, b1, wd, bd, sw1, sb1, sw2, sb2, w3, b3) = params
    x = jnp.transpose(x_nchw, (0, 2, 3, 1))
    N, H, W, _ = x.shape
    K = wd.shape[0]
    P = K // 2
    y = _hardswish(x @ w1 + b1)
    yp = jnp.pad(y, ((0, 0), (P, P), (P, P), (0, 0)))
    acc = jnp.zeros_like(y)
    for dh in range(K):
        for dw in range(K):
            acc = acc + yp[:, dh:dh + H, dw:dw + W, :] * wd[dh, dw, :]
    y = _hardswish(acc + bd)
    z = jnp.maximum(y @ sw1 + sb1, 0.0)
    z = z @ sw2 + sb2
    out = z @ w3 + b3
    return jnp.transpose(out, (0, 3, 1, 2))


if __name__ == "__main__":
    key = jax.random.PRNGKey(0)
    kx, kp = jax.random.split(key)

    Cin, H, W = 8, 16, 16
    Cexp, Cout, K = 32, 8, 3
    params = make_params(kp, Cin, Cexp, Cout, K)

    # Case 1: required small shape (N=2 -> Nb=1, grid=(2,)).
    x2 = jax.random.normal(kx, (2, Cin, H, W), jnp.float32)
    out2 = jax.block_until_ready(inverted_residual(x2, params))
    ref2 = reference(x2, params)
    assert out2.shape == (2, Cout, H, W)
    assert jnp.allclose(out2, ref2, atol=2e-2, rtol=2e-2), "mismatch vs JAX reference (N=2)"

    # Case 2: exercise the batched lane-axis path (N=4 -> Nb=2 images per grid step).
    x4 = jax.random.normal(jax.random.fold_in(kx, 1), (4, Cin, H, W), jnp.float32)
    out4 = jax.block_until_ready(inverted_residual(x4, params))
    ref4 = reference(x4, params)
    assert out4.shape == (4, Cout, H, W)
    assert jnp.allclose(out4, ref4, atol=2e-2, rtol=2e-2), "mismatch vs JAX reference (N=4)"

    print("KERNEL_OK")
</pallas_src>

<mosaic_0001>
module attributes {stable_mosaic.version = 11 : i64} {
  func.func @_inverted_residual_kernel(%arg0: i32, %arg1: memref<1x8x256xbf16, #tpu.memory_space<vmem>>, %arg2: memref<32x8xbf16, #tpu.memory_space<vmem>>, %arg3: memref<32x1xf32, #tpu.memory_space<vmem>>, %arg4: memref<32x9xf32, #tpu.memory_space<vmem>>, %arg5: memref<32x1xf32, #tpu.memory_space<vmem>>, %arg6: memref<9x256xf32, #tpu.memory_space<vmem>>, %arg7: memref<8x32xbf16, #tpu.memory_space<vmem>>, %arg8: memref<8x1xf32, #tpu.memory_space<vmem>>, %arg9: memref<8x8xbf16, #tpu.memory_space<vmem>>, %arg10: memref<8x1xf32, #tpu.memory_space<vmem>>, %arg11: memref<1x8x256xf32, #tpu.memory_space<vmem>>) attributes {dimension_semantics = [#tpu.dimension_semantics<parallel>], iteration_bounds = array<i64: 2>, scalar_prefetch = 0 : i64, scratch_operands = 0 : i64, tpu.core_type = #tpu.core_type<tc>, window_params = [{transform_indices = @transform_0, window_bounds = array<i64: 1, 8, 256>}, {pipeline_mode = #tpu.pipeline_mode<synchronous>, transform_indices = @transform_1, window_bounds = array<i64: 32, 8>}, {pipeline_mode = #tpu.pipeline_mode<synchronous>, transform_indices = @transform_2, window_bounds = array<i64: 32, 1>}, {pipeline_mode = #tpu.pipeline_mode<synchronous>, transform_indices = @transform_3, window_bounds = array<i64: 32, 9>}, {pipeline_mode = #tpu.pipeline_mode<synchronous>, transform_indices = @transform_4, window_bounds = array<i64: 32, 1>}, {pipeline_mode = #tpu.pipeline_mode<synchronous>, transform_indices = @transform_5, window_bounds = array<i64: 9, 256>}, {pipeline_mode = #tpu.pipeline_mode<synchronous>, transform_indices = @transform_6, window_bounds = array<i64: 8, 32>}, {pipeline_mode = #tpu.pipeline_mode<synchronous>, transform_indices = @transform_7, window_bounds = array<i64: 8, 1>}, {pipeline_mode = #tpu.pipeline_mode<synchronous>, transform_indices = @transform_8, window_bounds = array<i64: 8, 8>}, {pipeline_mode = #tpu.pipeline_mode<synchronous>, transform_indices = @transform_9, window_bounds = array<i64: 8, 1>}, {transform_indices = @transform_10, window_bounds = array<i64: 1, 8, 256>}]} {
    %c0 = arith.constant 0 : index
    %c0_0 = arith.constant 0 : index
    %0 = vector.load %arg2[%c0, %c0_0] : memref<32x8xbf16, #tpu.memory_space<vmem>>, vector<32x8xbf16>
    %c0_1 = arith.constant 0 : index
    %c0_2 = arith.constant 0 : index
    %c0_3 = arith.constant 0 : index
    %1 = vector.load %arg1[%c0_1, %c0_2, %c0_3] : memref<1x8x256xbf16, #tpu.memory_space<vmem>>, vector<1x8x256xbf16>
    %2 = vector.shape_cast %1 : vector<1x8x256xbf16> to vector<8x256xbf16>
    %cst = arith.constant dense<0.000000e+00> : vector<32x256xf32>
    %3 = tpu.matmul %0, %2, %cst {dimension_numbers = #tpu.dot_dimension_numbers<[1], [0], [0], [1], [0, 0, 1, 1], [], []>} : vector<32x8xbf16>, vector<8x256xbf16>, vector<32x256xf32> -> vector<32x256xf32>
    %c0_4 = arith.constant 0 : index
    %c0_5 = arith.constant 0 : index
    %4 = vector.load %arg3[%c0_4, %c0_5] : memref<32x1xf32, #tpu.memory_space<vmem>>, vector<32x1xf32>
    %5 = vector.broadcast %4 : vector<32x1xf32> to vector<32x256xf32>
    %6 = arith.addf %3, %5 : vector<32x256xf32>
    %cst_6 = arith.constant 3.000000e+00 : f32
    %7 = vector.broadcast %cst_6 : f32 to vector<32x256xf32>
    %8 = arith.addf %6, %7 : vector<32x256xf32>
    %cst_7 = arith.constant 0.000000e+00 : f32
    %cst_8 = arith.constant 6.000000e+00 : f32
    %9 = vector.broadcast %cst_7 : f32 to vector<32x256xf32>
    %10 = arith.maximumf %9, %8 : vector<32x256xf32>
    %11 = vector.broadcast %cst_8 : f32 to vector<32x256xf32>
    %12 = arith.minimumf %11, %10 : vector<32x256xf32>
    %13 = arith.mulf %6, %12 : vector<32x256xf32>
    %c0_9 = arith.constant 0 : index
    %c0_10 = arith.constant 0 : index
    %14 = vector.load %arg4[%c0_9, %c0_10] : memref<32x9xf32, #tpu.memory_space<vmem>>, vector<32x9xf32>
    %c0_11 = arith.constant 0 : index
    %c0_12 = arith.constant 0 : index
    %15 = vector.load %arg6[%c0_11, %c0_12] : memref<9x256xf32, #tpu.memory_space<vmem>>, vector<9x256xf32>
    %cst_13 = arith.constant 0.000000e+00 : f32
    %16 = vector.broadcast %cst_13 : f32 to vector<32x256xf32>
    %c17_i32 = arith.constant 17 : i32
    %17 = tpu.dynamic_rotate %13 by %c17_i32 dim 1 : vector<32x256xf32>, i32 -> vector<32x256xf32>
    %18 = vector.extract_strided_slice %15 {offsets = [0, 0], sizes = [1, 256], strides = [1, 1]} : vector<9x256xf32> to vector<1x256xf32>
    %19 = vector.broadcast %18 : vector<1x256xf32> to vector<32x256xf32>
    %20 = arith.mulf %17, %19 : vector<32x256xf32>
    %21 = vector.extract_strided_slice %14 {offsets = [0, 0], sizes = [32, 1], strides = [1, 1]} : vector<32x9xf32> to vector<32x1xf32>
    %22 = vector.broadcast %21 : vector<32x1xf32> to vector<32x256xf32>
    %23 = arith.mulf %20, %22 : vector<32x256xf32>
    %24 = arith.addf %16, %23 : vector<32x256xf32>
    %c16_i32 = arith.constant 16 : i32
    %25 = tpu.dynamic_rotate %13 by %c16_i32 dim 1 : vector<32x256xf32>, i32 -> vector<32x256xf32>
    %26 = vector.extract_strided_slice %15 {offsets = [1, 0], sizes = [1, 256], strides = [1, 1]} : vector<9x256xf32> to vector<1x256xf32>
    %27 = vector.broadcast %26 : vector<1x256xf32> to vector<32x256xf32>
    %28 = arith.mulf %25, %27 : vector<32x256xf32>
    %29 = vector.extract_strided_slice %14 {offsets = [0, 1], sizes = [32, 1], strides = [1, 1]} : vector<32x9xf32> to vector<32x1xf32>
    %30 = vector.broadcast %29 : vector<32x1xf32> to vector<32x256xf32>
    %31 = arith.mulf %28, %30 : vector<32x256xf32>
    %32 = arith.addf %24, %31 : vector<32x256xf32>
    %c15_i32 = arith.constant 15 : i32
    %33 = tpu.dynamic_rotate %13 by %c15_i32 dim 1 : vector<32x256xf32>, i32 -> vector<32x256xf32>
    %34 = vector.extract_strided_slice %15 {offsets = [2, 0], sizes = [1, 256], strides = [1, 1]} : vector<9x256xf32> to vector<1x256xf32>
    %35 = vector.broadcast %34 : vector<1x256xf32> to vector<32x256xf32>
    %36 = arith.mulf %33, %35 : vector<32x256xf32>
    %37 = vector.extract_strided_slice %14 {offsets = [0, 2], sizes = [32, 1], strides = [1, 1]} : vector<32x9xf32> to vector<32x1xf32>
    %38 = vector.broadcast %37 : vector<32x1xf32> to vector<32x256xf32>
    %39 = arith.mulf %36, %38 : vector<32x256xf32>
    %40 = arith.addf %32, %39 : vector<32x256xf32>
    %c1_i32 = arith.constant 1 : i32
    %41 = tpu.dynamic_rotate %13 by %c1_i32 dim 1 : vector<32x256xf32>, i32 -> vector<32x256xf32>
    %42 = vector.extract_strided_slice %15 {offsets = [3, 0], sizes = [1, 256], strides = [1, 1]} : vector<9x256xf32> to vector<1x256xf32>
    %43 = vector.broadcast %42 : vector<1x256xf32> to vector<32x256xf32>
    %44 = arith.mulf %41, %43 : vector<32x256xf32>
    %45 = vector.extract_strided_slice %14 {offsets = [0, 3], sizes = [32, 1], strides = [1, 1]} : vector<32x9xf32> to vector<32x1xf32>
    %46 = vector.broadcast %45 : vector<32x1xf32> to vector<32x256xf32>
    %47 = arith.mulf %44, %46 : vector<32x256xf32>
    %48 = arith.addf %40, %47 : vector<32x256xf32>
    %49 = vector.extract_strided_slice %14 {offsets = [0, 4], sizes = [32, 1], strides = [1, 1]} : vector<32x9xf32> to vector<32x1xf32>
    %50 = vector.broadcast %49 : vector<32x1xf32> to vector<32x256xf32>
    %51 = arith.mulf %13, %50 : vector<32x256xf32>
    %52 = arith.addf %48, %51 : vector<32x256xf32>
    %c255_i32 = arith.constant 255 : i32
    %53 = tpu.dynamic_rotate %13 by %c255_i32 dim 1 : vector<32x256xf32>, i32 -> vector<32x256xf32>
    %54 = vector.extract_strided_slice %15 {offsets = [5, 0], sizes = [1, 256], strides = [1, 1]} : vector<9x256xf32> to vector<1x256xf32>
    %55 = vector.broadcast %54 : vector<1x256xf32> to vector<32x256xf32>
    %56 = arith.mulf %53, %55 : vector<32x256xf32>
    %57 = vector.extract_strided_slice %14 {offsets = [0, 5], sizes = [32, 1], strides = [1, 1]} : vector<32x9xf32> to vector<32x1xf32>
    %58 = vector.broadcast %57 : vector<32x1xf32> to vector<32x256xf32>
    %59 = arith.mulf %56, %58 : vector<32x256xf32>
    %60 = arith.addf %52, %59 : vector<32x256xf32>
    %c241_i32 = arith.constant 241 : i32
    %61 = tpu.dynamic_rotate %13 by %c241_i32 dim 1 : vector<32x256xf32>, i32 -> vector<32x256xf32>
    %62 = vector.extract_strided_slice %15 {offsets = [6, 0], sizes = [1, 256], strides = [1, 1]} : vector<9x256xf32> to vector<1x256xf32>
    %63 = vector.broadcast %62 : vector<1x256xf32> to vector<32x256xf32>
    %64 = arith.mulf %61, %63 : vector<32x256xf32>
    %65 = vector.extract_strided_slice %14 {offsets = [0, 6], sizes = [32, 1], strides = [1, 1]} : vector<32x9xf32> to vector<32x1xf32>
    %66 = vector.broadcast %65 : vector<32x1xf32> to vector<32x256xf32>
    %67 = arith.mulf %64, %66 : vector<32x256xf32>
    %68 = arith.addf %60, %67 : vector<32x256xf32>
    %c240_i32 = arith.constant 240 : i32
    %69 = tpu.dynamic_rotate %13 by %c240_i32 dim 1 : vector<32x256xf32>, i32 -> vector<32x256xf32>
    %70 = vector.extract_strided_slice %15 {offsets = [7, 0], sizes = [1, 256], strides = [1, 1]} : vector<9x256xf32> to vector<1x256xf32>
    %71 = vector.broadcast %70 : vector<1x256xf32> to vector<32x256xf32>
    %72 = arith.mulf %69, %71 : vector<32x256xf32>
    %73 = vector.extract_strided_slice %14 {offsets = [0, 7], sizes = [32, 1], strides = [1, 1]} : vector<32x9xf32> to vector<32x1xf32>
    %74 = vector.broadcast %73 : vector<32x1xf32> to vector<32x256xf32>
    %75 = arith.mulf %72, %74 : vector<32x256xf32>
    %76 = arith.addf %68, %75 : vector<32x256xf32>
    %c239_i32 = arith.constant 239 : i32
    %77 = tpu.dynamic_rotate %13 by %c239_i32 dim 1 : vector<32x256xf32>, i32 -> vector<32x256xf32>
    %78 = vector.extract_strided_slice %15 {offsets = [8, 0], sizes = [1, 256], strides = [1, 1]} : vector<9x256xf32> to vector<1x256xf32>
    %79 = vector.broadcast %78 : vector<1x256xf32> to vector<32x256xf32>
    %80 = arith.mulf %77, %79 : vector<32x256xf32>
    %81 = vector.extract_strided_slice %14 {offsets = [0, 8], sizes = [32, 1], strides = [1, 1]} : vector<32x9xf32> to vector<32x1xf32>
    %82 = vector.broadcast %81 : vector<32x1xf32> to vector<32x256xf32>
    %83 = arith.mulf %80, %82 : vector<32x256xf32>
    %84 = arith.addf %76, %83 : vector<32x256xf32>
    %c0_14 = arith.constant 0 : index
    %c0_15 = arith.constant 0 : index
    %85 = vector.load %arg5[%c0_14, %c0_15] : memref<32x1xf32, #tpu.memory_space<vmem>>, vector<32x1xf32>
    %86 = vector.broadcast %85 : vector<32x1xf32> to vector<32x256xf32>
    %87 = arith.addf %84, %86 : vector<32x256xf32>
    %cst_16 = arith.constant 3.000000e+00 : f32
    %88 = vector.broadcast %cst_16 : f32 to vector<32x256xf32>
    %89 = arith.addf %87, %88 : vector<32x256xf32>
    %cst_17 = arith.constant 0.000000e+00 : f32
    %cst_18 = arith.constant 6.000000e+00 : f32
    %90 = vector.broadcast %cst_17 : f32 to vector<32x256xf32>
    %91 = arith.maximumf %90, %89 : vector<32x256xf32>
    %92 = vector.broadcast %cst_18 : f32 to vector<32x256xf32>
    %93 = arith.minimumf %92, %91 : vector<32x256xf32>
    %94 = arith.mulf %87, %93 : vector<32x256xf32>
    %c0_19 = arith.constant 0 : index
    %c0_20 = arith.constant 0 : index
    %95 = vector.load %arg7[%c0_19, %c0_20] : memref<8x32xbf16, #tpu.memory_space<vmem>>, vector<8x32xbf16>
    %96 = arith.truncf %94 : vector<32x256xf32> to vector<32x256xbf16>
    %cst_21 = arith.constant dense<0.000000e+00> : vector<8x256xf32>
    %97 = tpu.matmul %95, %96, %cst_21 {dimension_numbers = #tpu.dot_dimension_numbers<[1], [0], [0], [1], [0, 0, 1, 1], [], []>} : vector<8x32xbf16>, vector<32x256xbf16>, vector<8x256xf32> -> vector<8x256xf32>
    %c0_22 = arith.constant 0 : index
    %c0_23 = arith.constant 0 : index
    %98 = vector.load %arg8[%c0_22, %c0_23] : memref<8x1xf32, #tpu.memory_space<vmem>>, vector<8x1xf32>
    %99 = vector.broadcast %98 : vector<8x1xf32> to vector<8x256xf32>
    %100 = arith.addf %97, %99 : vector<8x256xf32>
    %cst_24 = arith.constant 0.000000e+00 : f32
    %101 = vector.broadcast %cst_24 : f32 to vector<8x256xf32>
    %102 = arith.maximumf %100, %101 : vector<8x256xf32>
    %c0_25 = arith.constant 0 : index
    %c0_26 = arith.constant 0 : index
    %103 = vector.load %arg9[%c0_25, %c0_26] : memref<8x8xbf16, #tpu.memory_space<vmem>>, vector<8x8xbf16>
    %104 = arith.truncf %102 : vector<8x256xf32> to vector<8x256xbf16>
    %cst_27 = arith.constant dense<0.000000e+00> : vector<8x256xf32>
    %105 = tpu.matmul %103, %104, %cst_27 {dimension_numbers = #tpu.dot_dimension_numbers<[1], [0], [0], [1], [0, 0, 1, 1], [], []>} : vector<8x8xbf16>, vector<8x256xbf16>, vector<8x256xf32> -> vector<8x256xf32>
    %c0_28 = arith.constant 0 : index
    %c0_29 = arith.constant 0 : index
    %106 = vector.load %arg10[%c0_28, %c0_29] : memref<8x1xf32, #tpu.memory_space<vmem>>, vector<8x1xf32>
    %107 = vector.broadcast %106 : vector<8x1xf32> to vector<8x256xf32>
    %108 = arith.addf %105, %107 : vector<8x256xf32>
    %c0_30 = arith.constant 0 : index
    %c0_31 = arith.constant 0 : index
    %c0_32 = arith.constant 0 : index
    %109 = vector.load %arg11[%c0_30, %c0_31, %c0_32] : memref<1x8x256xf32, #tpu.memory_space<vmem>>, vector<1x8x256xf32>
    %110 = vector.shape_cast %109 : vector<1x8x256xf32> to vector<8x256xf32>
    %111 = vector.shape_cast %108 : vector<8x256xf32> to vector<1x8x256xf32>
    tpu.vector_store %arg11[%c0_30, %c0_31, %c0_32], %111 {strides = array<i32>} : memref<1x8x256xf32, #tpu.memory_space<vmem>>, vector<1x8x256xf32>,
    return
  }
  func.func @transform_0(%arg0: i32) -> (i32, i32, i32) {
    %c0_i32 = arith.constant 0 : i32
    %c0_i32_0 = arith.constant 0 : i32
    %c0_i32_1 = arith.constant 0 : i32
    return %arg0, %c0_i32, %c0_i32_0 : i32, i32, i32
  }
  func.func @transform_1(%arg0: i32) -> (i32, i32) {
    %c0_i32 = arith.constant 0 : i32
    %c0_i32_0 = arith.constant 0 : i32
    %c0_i32_1 = arith.constant 0 : i32
    return %c0_i32, %c0_i32_0 : i32, i32
  }
  func.func @transform_2(%arg0: i32) -> (i32, i32) {
    %c0_i32 = arith.constant 0 : i32
    %c0_i32_0 = arith.constant 0 : i32
    %c0_i32_1 = arith.constant 0 : i32
    return %c0_i32, %c0_i32_0 : i32, i32
  }
  func.func @transform_3(%arg0: i32) -> (i32, i32) {
    %c0_i32 = arith.constant 0 : i32
    %c0_i32_0 = arith.constant 0 : i32
    %c0_i32_1 = arith.constant 0 : i32
    return %c0_i32, %c0_i32_0 : i32, i32
  }
  func.func @transform_4(%arg0: i32) -> (i32, i32) {
    %c0_i32 = arith.constant 0 : i32
    %c0_i32_0 = arith.constant 0 : i32
    %c0_i32_1 = arith.constant 0 : i32
    return %c0_i32, %c0_i32_0 : i32, i32
  }
  func.func @transform_5(%arg0: i32) -> (i32, i32) {
    %c0_i32 = arith.constant 0 : i32
    %c0_i32_0 = arith.constant 0 : i32
    %c0_i32_1 = arith.constant 0 : i32
    return %c0_i32, %c0_i32_0 : i32, i32
  }
  func.func @transform_6(%arg0: i32) -> (i32, i32) {
    %c0_i32 = arith.constant 0 : i32
    %c0_i32_0 = arith.constant 0 : i32
    %c0_i32_1 = arith.constant 0 : i32
    return %c0_i32, %c0_i32_0 : i32, i32
  }
  func.func @transform_7(%arg0: i32) -> (i32, i32) {
    %c0_i32 = arith.constant 0 : i32
    %c0_i32_0 = arith.constant 0 : i32
    %c0_i32_1 = arith.constant 0 : i32
    return %c0_i32, %c0_i32_0 : i32, i32
  }
  func.func @transform_8(%arg0: i32) -> (i32, i32) {
    %c0_i32 = arith.constant 0 : i32
    %c0_i32_0 = arith.constant 0 : i32
    %c0_i32_1 = arith.constant 0 : i32
    return %c0_i32, %c0_i32_0 : i32, i32
  }
  func.func @transform_9(%arg0: i32) -> (i32, i32) {
    %c0_i32 = arith.constant 0 : i32
    %c0_i32_0 = arith.constant 0 : i32
    %c0_i32_1 = arith.constant 0 : i32
    return %c0_i32, %c0_i32_0 : i32, i32
  }
  func.func @transform_10(%arg0: i32) -> (i32, i32, i32) {
    %c0_i32 = arith.constant 0 : i32
    %c0_i32_0 = arith.constant 0 : i32
    %c0_i32_1 = arith.constant 0 : i32
    return %arg0, %c0_i32, %c0_i32_0 : i32, i32, i32
  }
}

</mosaic_0001>

<llo_original>
// kernel: inverted_residual.1
$region0: #{inverted_residual.1}
  #allocation0 [shape = 'u32[]', space=smem, size = 0x4, offset = 0x4, fixed_abs, tag = 'smem constant byte address 0x4 - core index']
  #allocation1 [shape = 'u32[72,128]{1,0:T(1,128)}', space=vmem, size = 0x9000, scoped, tag = 'internal scratch']
  %s0 = inlined_call_operand.vmem [shape: bf16[2,8,256], index: 0, kind: input, shape index: {}]
  %s1 = inlined_call_operand.vmem [shape: bf16[32,8], index: 1, kind: input, shape index: {}]
  %s2 = inlined_call_operand.vmem [shape: f32[32,1], index: 2, kind: input, shape index: {}]
  %s3 = inlined_call_operand.vmem [shape: f32[32,9], index: 3, kind: input, shape index: {}]
  %s4 = inlined_call_operand.vmem [shape: f32[32,1], index: 4, kind: input, shape index: {}]
  %s5 = inlined_call_operand.vmem [shape: f32[9,256], index: 5, kind: input, shape index: {}]
  %s6 = inlined_call_operand.vmem [shape: bf16[8,32], index: 6, kind: input, shape index: {}]
  %s7 = inlined_call_operand.vmem [shape: f32[8,1], index: 7, kind: input, shape index: {}]
  %s8 = inlined_call_operand.vmem [shape: bf16[8,8], index: 8, kind: input, shape index: {}]
  %s9 = inlined_call_operand.vmem [shape: f32[8,1], index: 9, kind: input, shape index: {}]
  %s10 = inlined_call_operand.vmem [shape: f32[2,8,256], index: 10, kind: output, shape index: {}]
  %s11 = sld [smem:[#allocation0]]
  $region73: #{inverted_residual.1} parent=0
    _
  %s13 = ssub.s32 1, %s11
  %s14 = scalar_select 0, %s13, %s11
  loop: start=0, step=1, limit=4
  $region2: #{inverted_residual.1} parent=0 // loop_pre_header
    _
  $region3: #{inverted_residual.1} parent=0 // loop_header
    %s16 = sphi 0, %s20
    %p17 = scmp.ge.s32.totalorder %s16, 4
    %s26 = sphi 0, %s28
    %s29 = sphi 0, %s26
    %s30 = sphi 0, %s29
    %s46 = sphi 0, %s30
    %s50 = sphi 0, %s50
    %s52 = sphi 0, %s50
    %s53 = sphi 0, %s52
    %s67 = sphi 0, %s53
    %s71 = sphi 0, %s71
    %s73 = sphi 0, %s71
    %s74 = sphi 0, %s73
    %s88 = sphi 0, %s74
    %s92 = sphi 0, %s92
    %s94 = sphi 0, %s92
    %s95 = sphi 0, %s94
    %s109 = sphi 0, %s95
    %s113 = sphi 0, %s113
    %s115 = sphi 0, %s113
    %s116 = sphi 0, %s115
    %s130 = sphi 0, %s116
    %s134 = sphi 0, %s134
    %s136 = sphi 0, %s134
    %s137 = sphi 0, %s136
    %s151 = sphi 0, %s137
    %s155 = sphi 0, %s155
    %s157 = sphi 0, %s155
    %s158 = sphi 0, %s157
    %s172 = sphi 0, %s158
    %s176 = sphi 0, %s176
    %s178 = sphi 0, %s176
    %s179 = sphi 0, %s178
    %s193 = sphi 0, %s179
    %s197 = sphi 0, %s197
    %s199 = sphi 0, %s197
    %s200 = sphi 0, %s199
    %s214 = sphi 0, %s200
    %s218 = sphi 0, %s218
    %s220 = sphi 0, %s218
    %s221 = sphi 0, %s220
    %s235 = sphi 0, %s221
    %s241 = sphi 0, %s243
    %s244 = sphi 0, %s241
    %s245 = sphi 0, %s244
    %s261 = sphi 0, %s245
  $region4: #{inverted_residual.1} parent=0 // loop_header_branch
    %19 = sbr.rel (%p17) target = $region8
  $region5: #{inverted_residual.1} parent=0 // loop_body
    %s21 = ssub.s32 %s16, 1
    %s22 = ssub.s32 %s16, 2
    %s23 = sadd.s32 %s16, 1
    %s24 = ssub.s32 %s16, %s23
    %p25 = scmp.eq.s32.totalorder %s24, 0
    %s27 = sadd.s32 %s26, 1
    %s28 = scalar_select %p25, %s26, %s27
    %p31 = pneg %p25
    %p32 = scmp.eq.s32.totalorder %s16, 1
    %p33 = por %p31, %p32
    %p34 = scmp.ne.s32.totalorder %s26, %s29
    %p35 = scmp.eq.s32.totalorder %s16, 0
    %p36 = por %p34, %p35
    %p37 = scmp.ne.s32.totalorder %s26, %s29
    %p38 = scmp.eq.s32.totalorder %s21, 1
    %p39 = por %p37, %p38
    %p40 = scmp.ne.s32.totalorder %s29, %s30
    %p41 = scmp.eq.s32.totalorder %s21, 0
    %p42 = por %p40, %p41
    %p43 = scmp.ne.s32.totalorder %s29, %s30
    %p44 = scmp.eq.s32.totalorder %s22, 1
    %p45 = por %p43, %p44
    %p47 = scmp.ne.s32.totalorder %s30, %s46
    %p48 = scmp.eq.s32.totalorder %s22, 0
    %p49 = por %p47, %p48
    %s51 = sadd.s32 %s50, 1
    %p54 = scmp.eq.s32.totalorder %s16, 1
    %p55 = scmp.ne.s32.totalorder %s50, %s52
    %p56 = scmp.eq.s32.totalorder %s16, 0
    %p57 = por %p55, %p56
    %p58 = scmp.ne.s32.totalorder %s50, %s52
    %p59 = scmp.eq.s32.totalorder %s21, 1
    %p60 = por %p58, %p59
    %p61 = scmp.ne.s32.totalorder %s52, %s53
    %p62 = scmp.eq.s32.totalorder %s21, 0
    %p63 = por %p61, %p62
    %p64 = scmp.ne.s32.totalorder %s52, %s53
    %p65 = scmp.eq.s32.totalorder %s22, 1
    %p66 = por %p64, %p65
    %p68 = scmp.ne.s32.totalorder %s53, %s67
    %p69 = scmp.eq.s32.totalorder %s22, 0
    %p70 = por %p68, %p69
    %s72 = sadd.s32 %s71, 1
    %p75 = scmp.eq.s32.totalorder %s16, 1
    %p76 = scmp.ne.s32.totalorder %s71, %s73
    %p77 = scmp.eq.s32.totalorder %s16, 0
    %p78 = por %p76, %p77
    %p79 = scmp.ne.s32.totalorder %s71, %s73
    %p80 = scmp.eq.s32.totalorder %s21, 1
    %p81 = por %p79, %p80
    %p82 = scmp.ne.s32.totalorder %s73, %s74
    %p83 = scmp.eq.s32.totalorder %s21, 0
    %p84 = por %p82, %p83
    %p85 = scmp.ne.s32.totalorder %s73, %s74
    %p86 = scmp.eq.s32.totalorder %s22, 1
    %p87 = por %p85, %p86
    %p89 = scmp.ne.s32.totalorder %s74, %s88
    %p90 = scmp.eq.s32.totalorder %s22, 0
    %p91 = por %p89, %p90
    %s93 = sadd.s32 %s92, 1
    %p96 = scmp.eq.s32.totalorder %s16, 1
    %p97 = scmp.ne.s32.totalorder %s92, %s94
    %p98 = scmp.eq.s32.totalorder %s16, 0
    %p99 = por %p97, %p98
    %p100 = scmp.ne.s32.totalorder %s92, %s94
    %p101 = scmp.eq.s32.totalorder %s21, 1
    %p102 = por %p100, %p101
    %p103 = scmp.ne.s32.totalorder %s94, %s95
    %p104 = scmp.eq.s32.totalorder %s21, 0
    %p105 = por %p103, %p104
    %p106 = scmp.ne.s32.totalorder %s94, %s95
    %p107 = scmp.eq.s32.totalorder %s22, 1
    %p108 = por %p106, %p107
    %p110 = scmp.ne.s32.totalorder %s95, %s109
    %p111 = scmp.eq.s32.totalorder %s22, 0
    %p112 = por %p110, %p111
    %s114 = sadd.s32 %s113, 1
    %p117 = scmp.eq.s32.totalorder %s16, 1
    %p118 = scmp.ne.s32.totalorder %s113, %s115
    %p119 = scmp.eq.s32.totalorder %s16, 0
    %p120 = por %p118, %p119
    %p121 = scmp.ne.s32.totalorder %s113, %s115
    %p122 = scmp.eq.s32.totalorder %s21, 1
    %p123 = por %p121, %p122
    %p124 = scmp.ne.s32.totalorder %s115, %s116
    %p125 = scmp.eq.s32.totalorder %s21, 0
    %p126 = por %p124, %p125
    %p127 = scmp.ne.s32.totalorder %s115, %s116
    %p128 = scmp.eq.s32.totalorder %s22, 1
    %p129 = por %p127, %p128
    %p131 = scmp.ne.s32.totalorder %s116, %s130
    %p132 = scmp.eq.s32.totalorder %s22, 0
    %p133 = por %p131, %p132
    %s135 = sadd.s32 %s134, 1
    %p138 = scmp.eq.s32.totalorder %s16, 1
    %p139 = scmp.ne.s32.totalorder %s134, %s136
    %p140 = scmp.eq.s32.totalorder %s16, 0
    %p141 = por %p139, %p140
    %p142 = scmp.ne.s32.totalorder %s134, %s136
    %p143 = scmp.eq.s32.totalorder %s21, 1
    %p144 = por %p142, %p143
    %p145 = scmp.ne.s32.totalorder %s136, %s137
    %p146 = scmp.eq.s32.totalorder %s21, 0
    %p147 = por %p145, %p146
    %p148 = scmp.ne.s32.totalorder %s136, %s137
    %p149 = scmp.eq.s32.totalorder %s22, 1
    %p150 = por %p148, %p149
    %p152 = scmp.ne.s32.totalorder %s137, %s151
    %p153 = scmp.eq.s32.totalorder %s22, 0
    %p154 = por %p152, %p153
    %s156 = sadd.s32 %s155, 1
    %p159 = scmp.eq.s32.totalorder %s16, 1
    %p160 = scmp.ne.s32.totalorder %s155, %s157
    %p161 = scmp.eq.s32.totalorder %s16, 0
    %p162 = por %p160, %p161
    %p163 = scmp.ne.s32.totalorder %s155, %s157
    %p164 = scmp.eq.s32.totalorder %s21, 1
    %p165 = por %p163, %p164
    %p166 = scmp.ne.s32.totalorder %s157, %s158
    %p167 = scmp.eq.s32.totalorder %s21, 0
    %p168 = por %p166, %p167
    %p169 = scmp.ne.s32.totalorder %s157, %s158
    %p170 = scmp.eq.s32.totalorder %s22, 1
    %p171 = por %p169, %p170
    %p173 = scmp.ne.s32.totalorder %s158, %s172
    %p174 = scmp.eq.s32.totalorder %s22, 0
    %p175 = por %p173, %p174
    %s177 = sadd.s32 %s176, 1
    %p180 = scmp.eq.s32.totalorder %s16, 1
    %p181 = scmp.ne.s32.totalorder %s176, %s178
    %p182 = scmp.eq.s32.totalorder %s16, 0
    %p183 = por %p181, %p182
    %p184 = scmp.ne.s32.totalorder %s176, %s178
    %p185 = scmp.eq.s32.totalorder %s21, 1
    %p186 = por %p184, %p185
    %p187 = scmp.ne.s32.totalorder %s178, %s179
    %p188 = scmp.eq.s32.totalorder %s21, 0
    %p189 = por %p187, %p188
    %p190 = scmp.ne.s32.totalorder %s178, %s179
    %p191 = scmp.eq.s32.totalorder %s22, 1
    %p192 = por %p190, %p191
    %p194 = scmp.ne.s32.totalorder %s179, %s193
    %p195 = scmp.eq.s32.totalorder %s22, 0
    %p196 = por %p194, %p195
    %s198 = sadd.s32 %s197, 1
    %p201 = scmp.eq.s32.totalorder %s16, 1
    %p202 = scmp.ne.s32.totalorder %s197, %s199
    %p203 = scmp.eq.s32.totalorder %s16, 0
    %p204 = por %p202, %p203
    %p205 = scmp.ne.s32.totalorder %s197, %s199
    %p206 = scmp.eq.s32.totalorder %s21, 1
    %p207 = por %p205, %p206
    %p208 = scmp.ne.s32.totalorder %s199, %s200
    %p209 = scmp.eq.s32.totalorder %s21, 0
    %p210 = por %p208, %p209
    %p211 = scmp.ne.s32.totalorder %s199, %s200
    %p212 = scmp.eq.s32.totalorder %s22, 1
    %p213 = por %p211, %p212
    %p215 = scmp.ne.s32.totalorder %s200, %s214
    %p216 = scmp.eq.s32.totalorder %s22, 0
    %p217 = por %p215, %p216
    %s219 = sadd.s32 %s218, 1
    %p222 = scmp.eq.s32.totalorder %s16, 1
    %p223 = scmp.ne.s32.totalorder %s218, %s220
    %p224 = scmp.eq.s32.totalorder %s16, 0
    %p225 = por %p223, %p224
    %p226 = scmp.ne.s32.totalorder %s218, %s220
    %p227 = scmp.eq.s32.totalorder %s21, 1
    %p228 = por %p226, %p227
    %p229 = scmp.ne.s32.totalorder %s220, %s221
    %p230 = scmp.eq.s32.totalorder %s21, 0
    %p231 = por %p229, %p230
    %p232 = scmp.ne.s32.totalorder %s220, %s221
    %p233 = scmp.eq.s32.totalorder %s22, 1
    %p234 = por %p232, %p233
    %p236 = scmp.ne.s32.totalorder %s221, %s235
    %p237 = scmp.eq.s32.totalorder %s22, 0
    %p238 = por %p236, %p237
    %s239 = ssub.s32 %s16, %s23
    %p240 = scmp.eq.s32.totalorder %s239, 0
    %s242 = sadd.s32 %s241, 1
    %s243 = scalar_select %p240, %s241, %s242
    %p246 = pneg %p240
    %p247 = scmp.eq.s32.totalorder %s16, 1
    %p248 = por %p246, %p247
    %p249 = scmp.ne.s32.totalorder %s241, %s244
    %p250 = scmp.eq.s32.totalorder %s16, 0
    %p251 = por %p249, %p250
    %p252 = scmp.ne.s32.totalorder %s241, %s244
    %p253 = scmp.eq.s32.totalorder %s21, 1
    %p254 = por %p252, %p253
    %p255 = scmp.ne.s32.totalorder %s244, %s245
    %p256 = scmp.eq.s32.totalorder %s21, 0
    %p257 = por %p255, %p256
    %p258 = scmp.ne.s32.totalorder %s244, %s245
    %p259 = scmp.eq.s32.totalorder %s22, 1
    %p260 = por %p258, %p259
    %p262 = scmp.ne.s32.totalorder %s245, %s261
    %p263 = scmp.eq.s32.totalorder %s22, 0
    %p264 = por %p262, %p263
    %p265 = scmp.le.s32.totalorder 1, %s16
    %p266 = scmp.lt.s32.totalorder %s16, 3
    %p267 = pnand %p265, %p266
    %p268 = pneg %p267
    // Predicated region
    $region9: #{inverted_residual.1} parent=5 // pred_check
      _
    $region10: #{inverted_residual.1} parent=5 // pred_check_branch
      %270 = sbr.rel (%p267) target = $region12
    $region11: #{inverted_residual.1} parent=5 // pred_region
      %s271 = ssub.s32 %s16, 1
      // Predicated region
      $region13: #{inverted_residual.1} parent=11 // pred_check
        %p272 = pneg %p63
      $region14: #{inverted_residual.1} parent=11 // pred_check_branch
        %274 = sbr.rel (%p272) target = $region16
      $region15: #{inverted_residual.1} parent=11 // pred_region
        _
      $region16: #{inverted_residual.1} parent=11 // pred_fallthru
        _
      // Predicated region
      $region17: #{inverted_residual.1} parent=11 // pred_check
        %p275 = pneg %p84
      $region18: #{inverted_residual.1} parent=11 // pred_check_branch
        %277 = sbr.rel (%p275) target = $region20
      $region19: #{inverted_residual.1} parent=11 // pred_region
        _
      $region20: #{inverted_residual.1} parent=11 // pred_fallthru
        _
      // Predicated region
      $region21: #{inverted_residual.1} parent=11 // pred_check
        %p278 = pneg %p105
      $region22: #{inverted_residual.1} parent=11 // pred_check_branch
        %280 = sbr.rel (%p278) target = $region24
      $region23: #{inverted_residual.1} parent=11 // pred_region
        _
      $region24: #{inverted_residual.1} parent=11 // pred_fallthru
        _
      // Predicated region
      $region25: #{inverted_residual.1} parent=11 // pred_check
        %p281 = pneg %p126
      $region26: #{inverted_residual.1} parent=11 // pred_check_branch
        %283 = sbr.rel (%p281) target = $region28
      $region27: #{inverted_residual.1} parent=11 // pred_region
        _
      $region28: #{inverted_residual.1} parent=11 // pred_fallthru
        _
      // Predicated region
      $region29: #{inverted_residual.1} parent=11 // pred_check
        %p284 = pneg %p147
      $region30: #{inverted_residual.1} parent=11 // pred_check_branch
        %286 = sbr.rel (%p284) target = $region32
      $region31: #{inverted_residual.1} parent=11 // pred_region
        _
      $region32: #{inverted_residual.1} parent=11 // pred_fallthru
        _
      // Predicated region
      $region33: #{inverted_residual.1} parent=11 // pred_check
        %p287 = pneg %p168
      $region34: #{inverted_residual.1} parent=11 // pred_check_branch
        %289 = sbr.rel (%p287) target = $region36
      $region35: #{inverted_residual.1} parent=11 // pred_region
        _
      $region36: #{inverted_residual.1} parent=11 // pred_fallthru
        _
      // Predicated region
      $region37: #{inverted_residual.1} parent=11 // pred_check
        %p290 = pneg %p189
      $region38: #{inverted_residual.1} parent=11 // pred_check_branch
        %292 = sbr.rel (%p290) target = $region40
      $region39: #{inverted_residual.1} parent=11 // pred_region
        _
      $region40: #{inverted_residual.1} parent=11 // pred_fallthru
        _
      // Predicated region
      $region41: #{inverted_residual.1} parent=11 // pred_check
        %p293 = pneg %p210
      $region42: #{inverted_residual.1} parent=11 // pred_check_branch
        %295 = sbr.rel (%p293) target = $region44
      $region43: #{inverted_residual.1} parent=11 // pred_region
        _
      $region44: #{inverted_residual.1} parent=11 // pred_fallthru
        _
      // Predicated region
      $region45: #{inverted_residual.1} parent=11 // pred_check
        %p296 = pneg %p231
      $region46: #{inverted_residual.1} parent=11 // pred_check_branch
        %298 = sbr.rel (%p296) target = $region48
      $region47: #{inverted_residual.1} parent=11 // pred_region
        _
      $region48: #{inverted_residual.1} parent=11 // pred_fallthru
        _
    $region12: #{inverted_residual.1} parent=5 // pred_fallthru
      _
    %p299 = scmp.lt.s32.totalorder %s16, 2
    // Predicated region
    $region49: #{inverted_residual.1} parent=5 // pred_check
      %p300 = pneg %p299
    $region50: #{inverted_residual.1} parent=5 // pred_check_branch
      %302 = sbr.rel (%p300) target = $region52
    $region51: #{inverted_residual.1} parent=5 // pred_region
      // Predicated region
      $region53: #{inverted_residual.1} parent=51 // pred_check
        %p303 = pneg %p36
      $region54: #{inverted_residual.1} parent=51 // pred_check_branch
        %305 = sbr.rel (%p303) target = $region56
      $region55: #{inverted_residual.1} parent=51 // pred_region
        %p306 = scmp.lt.s32.totalorder %s16, 1
        %s307 = scalar_select %p306, %s16, 1
        %s308 = smul.addr %s307, 2
        %s309 = smul.addr %s308, 4
        %s310 = scalar_lea.vmem %s0, %s309
      $region56: #{inverted_residual.1} parent=51 // pred_fallthru
        _
    $region52: #{inverted_residual.1} parent=5 // pred_fallthru
      _
    %p311 = scmp.le.s32.totalorder 1, %s16
    %p312 = scmp.lt.s32.totalorder %s16, 3
    %p313 = pnand %p311, %p312
    %p314 = pneg %p313
    // Predicated region
    $region57: #{inverted_residual.1} parent=5 // pred_check
      _
    $region58: #{inverted_residual.1} parent=5 // pred_check_branch
      %316 = sbr.rel (%p313) target = $region60
    $region59: #{inverted_residual.1} parent=5 // pred_region
      %s317 = ssub.s32 %s16, 1
      %p318 = scmp.lt.s32.totalorder %s21, 1
      %s319 = scalar_select %p318, %s21, 1
      %s320 = smul.addr %s319, 2
      %s321 = smul.addr %s320, 4
      %s322 = scalar_lea.vmem %s0, %s321
      %p323 = pneg %p42
      %p324 = pneg %p39
      %p325 = pneg %p63
      %p326 = pneg %p60
      %p327 = pneg %p84
      %p328 = pneg %p81
      %p329 = pneg %p105
      %p330 = pneg %p102
      %p331 = pneg %p126
      %p332 = pneg %p123
      %p333 = pneg %p147
      %p334 = pneg %p144
      %p335 = pneg %p168
      %p336 = pneg %p165
      %p337 = pneg %p189
      %p338 = pneg %p186
      %p339 = pneg %p210
      %p340 = pneg %p207
      %p341 = pneg %p231
      %p342 = pneg %p228
      %p343 = pneg %p257
      %p344 = pneg %p254
      %p345 = scmp.lt.s32.totalorder %s21, 1
      %s346 = scalar_select %p345, %s21, 1
      %s347 = smul.addr %s346, 2
      %s348 = smul.addr %s347, 8
      %s349 = scalar_lea.vmem %s10, %s348
      %p350 = scmp.lt.s32.totalorder %s21, 1
      %s351 = scalar_select %p350, %s21, 1
      %s352 = smul.addr %s351, 2
      %s353 = smul.addr %s352, 4
      %s354 = scalar_lea.vmem %s0, %s353
      %p355 = scmp.lt.s32.totalorder %s21, 1
      %s356 = scalar_select %p355, %s21, 1
      %s357 = smul.addr %s356, 2
      %s358 = smul.addr %s357, 8
      %s359 = scalar_lea.vmem %s10, %s358
      %v361 = vld [vmem:[%s1] sm:$0xf]
      %v362 = vld [vmem:[%s1 + $0x4] sm:$0xf]
      %v363 = vld [vmem:[%s1 + $0x8] sm:$0xf]
      %v364 = vld [vmem:[%s1 + $0xc] sm:$0xf]
      %v365 = vld [vmem:[%s354] sm:$0xff]
      %v366 = vld [vmem:[%s2] sm:$0xff]
      %v367 = vld [vmem:[%s2 + $0x8] sm:$0xff]
      %v368 = vld [vmem:[%s2 + $0x10] sm:$0xff]
      %v369 = vld [vmem:[%s2 + $0x18] sm:$0xff]
      %371 = vset.pattern.permute.xlu0 0
      %372 = vperm.xlu0 %371, %v366
      %v373 = vpop.permute.xlu0 %372
      %376 = vset.pattern.permute.xlu0 0
      %377 = vperm.xlu0 %376, %v367
      %v378 = vpop.permute.xlu0 %377
      %381 = vset.pattern.permute.xlu0 0
      %382 = vperm.xlu0 %381, %v368
      %v383 = vpop.permute.xlu0 %382
      %386 = vset.pattern.permute.xlu0 0
      %387 = vperm.xlu0 %386, %v369
      %v388 = vpop.permute.xlu0 %387
      %v394 = vunpack.c.l.b16 %v361
      %v395 = vunpack.c.l.b16 %v362
      %v396 = vunpack.c.l.b16 %v363
      %v397 = vunpack.c.l.b16 %v364
      %v398 = vpack.c.b16 %v395, %v394
      %v399 = vpack.c.b16 %v397, %v396
      %v401 = vunpack.c.l.b16 %v365
      %v402 = vunpack.c.h.b16 %v365
      %v403 = vpack.c.b16 %v401, %v401
      %v404 = vpack.c.b16 %v402, %v402
      %vm405 = vcmask 64512
      %v407 = vsel %vm405, %v398, 0
      %v410 = vsel %vm405, %v399, 0
      %vm412 = vcmask 1043456
      %v414 = vsel %vm412, %v403, 0
      %v417 = vsel %vm412, %v404, 0
      %419 = vmatpush.bf16.msra.mxu0 0
      %420 = vmatpush.bf16.msra.mxu0 0
      %421 = vmatpush.bf16.msra.mxu0 0
      %422 = vmatpush.bf16.msra.mxu0 0
      %423 = vmatpush.bf16.msra.mxu0 0
      %424 = vmatpush.bf16.msra.mxu0 0
      %425 = vmatpush.bf16.msra.mxu0 0
      %426 = vmatpush.bf16.msra.mxu0 %v414
      %427 = vmatmul.bf16.gmra.mxu0 %v407
      %v428 = vpop.f32.mrf.mxu0
      %v429 = vadd.f32 %v373, %v428
      %v430 = vpop.f32.mrf.mxu0
      %v431 = vadd.f32 %v378, %v430
      %432 = vmatmul.bf16.gmra.mxu0 %v410
      %v433 = vpop.f32.mrf.mxu0
      %v434 = vadd.f32 %v383, %v433
      %v435 = vpop.f32.mrf.mxu0
      %v436 = vadd.f32 %v388, %v435
      %437 = vdwg.mxu0
      %438 = vmatpush.bf16.msra.mxu0 0
      %439 = vmatpush.bf16.msra.mxu0 0
      %440 = vmatpush.bf16.msra.mxu0 0
      %441 = vmatpush.bf16.msra.mxu0 0
      %442 = vmatpush.bf16.msra.mxu0 0
      %443 = vmatpush.bf16.msra.mxu0 0
      %444 = vmatpush.bf16.msra.mxu0 0
      %445 = vmatpush.bf16.msra.mxu0 %v417
      %446 = vmatmul.bf16.gmra.mxu0 %v407
      %v447 = vpop.f32.mrf.mxu0
      %v448 = vadd.f32 %v373, %v447
      %v449 = vpop.f32.mrf.mxu0
      %v450 = vadd.f32 %v378, %v449
      %451 = vmatmul.bf16.gmra.mxu0 %v410
      %v452 = vpop.f32.mrf.mxu0
      %v453 = vadd.f32 %v383, %v452
      %v454 = vpop.f32.mrf.mxu0
      %v455 = vadd.f32 %v388, %v454
      %456 = vdwg.mxu0
      %v457 = vadd.f32 %v429, 3.0
      %v458 = vadd.f32 %v448, 3.0
      %v459 = vadd.f32 %v431, 3.0
      %v460 = vadd.f32 %v450, 3.0
      %v461 = vadd.f32 %v434, 3.0
      %v462 = vadd.f32 %v453, 3.0
      %v463 = vadd.f32 %v436, 3.0
      %v464 = vadd.f32 %v455, 3.0
      %v465 = vmax.f32 %v457, 0.0
      %v466 = vmax.f32 %v458, 0.0
      %v467 = vmax.f32 %v459, 0.0
      %v468 = vmax.f32 %v460, 0.0
      %v469 = vmax.f32 %v461, 0.0
      %v470 = vmax.f32 %v462, 0.0
      %v471 = vmax.f32 %v463, 0.0
      %v472 = vmax.f32 %v464, 0.0
      %v473 = vmin.f32 %v465, 6.0
      %v474 = vmin.f32 %v466, 6.0
      %v475 = vmin.f32 %v467, 6.0
      %v476 = vmin.f32 %v468, 6.0
      %v477 = vmin.f32 %v469, 6.0
      %v478 = vmin.f32 %v470, 6.0
      %v479 = vmin.f32 %v471, 6.0
      %v480 = vmin.f32 %v472, 6.0
      %v481 = vmul.f32 %v429, %v473
      %v482 = vmul.f32 %v448, %v474
      %v483 = vmul.f32 %v431, %v475
      %v484 = vmul.f32 %v450, %v476
      %v485 = vmul.f32 %v434, %v477
      %v486 = vmul.f32 %v453, %v478
      %v487 = vmul.f32 %v436, %v479
      %v488 = vmul.f32 %v455, %v480
      %v489 = vld [vmem:[%s3] sm:$0xff]
      %v490 = vld [vmem:[%s3 + $0x8] sm:$0xff]
      %v491 = vld [vmem:[%s3 + $0x10] sm:$0xff]
      %v492 = vld [vmem:[%s3 + $0x18] sm:$0xff]
      %v493 = vld [vmem:[%s5] sm:$0xff]
      %v494 = vld [vmem:[%s5 + $0x8] sm:$0xff]
      %v495 = vld [vmem:[%s5 + $0x10] sm:$0x1]
      %v496 = vld [vmem:[%s5 + $0x18] sm:$0x1]
      %497 = vrot.lane.b32.xlu0 %v481, 17
      %v498 = vpop.permute.xlu0 %497
      %499 = vrot.lane.b32.xlu0 %v483, 17
      %v500 = vpop.permute.xlu0 %499
      %501 = vrot.lane.b32.xlu0 %v485, 17
      %v502 = vpop.permute.xlu0 %501
      %503 = vrot.lane.b32.xlu0 %v487, 17
      %v504 = vpop.permute.xlu0 %503
      %505 = vrot.lane.b32.xlu0 %v482, 17
      %v506 = vpop.permute.xlu0 %505
      %507 = vrot.lane.b32.xlu0 %v484, 17
      %v508 = vpop.permute.xlu0 %507
      %509 = vrot.lane.b32.xlu0 %v486, 17
      %v510 = vpop.permute.xlu0 %509
      %511 = vrot.lane.b32.xlu0 %v488, 17
      %v512 = vpop.permute.xlu0 %511
      %v513 = vlaneseq
      %v514 = vand.u32 %v513, 127
      %vm515 = vcmp.lt.s32.totalorder %v514, 17
      %v516 = vsel %vm515, %v498, %v506
      %v517 = vsel %vm515, %v500, %v508
      %v518 = vsel %vm515, %v502, %v510
      %v519 = vsel %vm515, %v504, %v512
      %v520 = vsel %vm515, %v506, %v498
      %v521 = vsel %vm515, %v508, %v500
      %v522 = vsel %vm515, %v510, %v502
      %v523 = vsel %vm515, %v512, %v504
      %v524 = vperm.slane %v493, 0
      %v525 = vperm.slane %v494, 0
      %v526 = vmul.f32 %v520, %v524
      %v527 = vmul.f32 %v516, %v525
      %v528 = vmul.f32 %v521, %v524
      %v529 = vmul.f32 %v517, %v525
      %v530 = vmul.f32 %v522, %v524
      %v531 = vmul.f32 %v518, %v525
      %v532 = vmul.f32 %v523, %v524
      %v533 = vmul.f32 %v519, %v525
      %535 = vset.pattern.permute.xlu0 0
      %536 = vperm.xlu0 %535, %v489
      %v537 = vpop.permute.xlu0 %536
      %540 = vset.pattern.permute.xlu0 0
      %541 = vperm.xlu0 %540, %v490
      %v542 = vpop.permute.xlu0 %541
      %545 = vset.pattern.permute.xlu0 0
      %546 = vperm.xlu0 %545, %v491
      %v547 = vpop.permute.xlu0 %546
      %550 = vset.pattern.permute.xlu0 0
      %551 = vperm.xlu0 %550, %v492
      %v552 = vpop.permute.xlu0 %551
      %v554 = vmul.f32 %v526, %v537
      %v555 = vmul.f32 %v527, %v537
      %v556 = vmul.f32 %v528, %v542
      %v557 = vmul.f32 %v529, %v542
      %v558 = vmul.f32 %v530, %v547
      %v559 = vmul.f32 %v531, %v547
      %v560 = vmul.f32 %v532, %v552
      %v561 = vmul.f32 %v533, %v552
      %v562 = vadd.f32 %v554, 0.0
      %v563 = vadd.f32 %v555, 0.0
      %v564 = vadd.f32 %v556, 0.0
      %v565 = vadd.f32 %v557, 0.0
      %v566 = vadd.f32 %v558, 0.0
      %v567 = vadd.f32 %v559, 0.0
      %v568 = vadd.f32 %v560, 0.0
      %v569 = vadd.f32 %v561, 0.0
      %570 = vrot.lane.b32.xlu0 %v481, 16
      %v571 = vpop.permute.xlu0 %570
      %572 = vrot.lane.b32.xlu0 %v483, 16
      %v573 = vpop.permute.xlu0 %572
      %574 = vrot.lane.b32.xlu0 %v485, 16
      %v575 = vpop.permute.xlu0 %574
      %576 = vrot.lane.b32.xlu0 %v487, 16
      %v577 = vpop.permute.xlu0 %576
      %578 = vrot.lane.b32.xlu0 %v482, 16
      %v579 = vpop.permute.xlu0 %578
      %580 = vrot.lane.b32.xlu0 %v484, 16
      %v581 = vpop.permute.xlu0 %580
      %582 = vrot.lane.b32.xlu0 %v486, 16
      %v583 = vpop.permute.xlu0 %582
      %584 = vrot.lane.b32.xlu0 %v488, 16
      %v585 = vpop.permute.xlu0 %584
      %vm586 = vcmp.lt.s32.totalorder %v514, 16
      %v587 = vsel %vm586, %v571, %v579
      %v588 = vsel %vm586, %v573, %v581
      %v589 = vsel %vm586, %v575, %v583
      %v590 = vsel %vm586, %v577, %v585
      %v591 = vsel %vm586, %v579, %v571
      %v592 = vsel %vm586, %v581, %v573
      %v593 = vsel %vm586, %v583, %v575
      %v594 = vsel %vm586, %v585, %v577
      %v595 = vperm.slane %v493, 1
      %v596 = vperm.slane %v494, 1
      %v597 = vmul.f32 %v591, %v595
      %v598 = vmul.f32 %v587, %v596
      %v599 = vmul.f32 %v592, %v595
      %v600 = vmul.f32 %v588, %v596
      %v601 = vmul.f32 %v593, %v595
      %v602 = vmul.f32 %v589, %v596
      %v603 = vmul.f32 %v594, %v595
      %v604 = vmul.f32 %v590, %v596
      %605 = vset.pattern.permute.xlu0 1
      %606 = vperm.xlu0 %605, %v489
      %v607 = vpop.permute.xlu0 %606
      %609 = vset.pattern.permute.xlu0 1
      %610 = vperm.xlu0 %609, %v490
      %v611 = vpop.permute.xlu0 %610
      %613 = vset.pattern.permute.xlu0 1
      %614 = vperm.xlu0 %613, %v491
      %v615 = vpop.permute.xlu0 %614
      %617 = vset.pattern.permute.xlu0 1
      %618 = vperm.xlu0 %617, %v492
      %v619 = vpop.permute.xlu0 %618
      %v621 = vmul.f32 %v597, %v607
      %v622 = vmul.f32 %v598, %v607
      %v623 = vmul.f32 %v599, %v611
      %v624 = vmul.f32 %v600, %v611
      %v625 = vmul.f32 %v601, %v615
      %v626 = vmul.f32 %v602, %v615
      %v627 = vmul.f32 %v603, %v619
      %v628 = vmul.f32 %v604, %v619
      %v629 = vadd.f32 %v562, %v621
      %v630 = vadd.f32 %v563, %v622
      %v631 = vadd.f32 %v564, %v623
      %v632 = vadd.f32 %v565, %v624
      %v633 = vadd.f32 %v566, %v625
      %v634 = vadd.f32 %v567, %v626
      %v635 = vadd.f32 %v568, %v627
      %v636 = vadd.f32 %v569, %v628
      %637 = vrot.lane.b32.xlu0 %v481, 15
      %v638 = vpop.permute.xlu0 %637
      %639 = vrot.lane.b32.xlu0 %v483, 15
      %v640 = vpop.permute.xlu0 %639
      %641 = vrot.lane.b32.xlu0 %v485, 15
      %v642 = vpop.permute.xlu0 %641
      %643 = vrot.lane.b32.xlu0 %v487, 15
      %v644 = vpop.permute.xlu0 %643
      %645 = vrot.lane.b32.xlu0 %v482, 15
      %v646 = vpop.permute.xlu0 %645
      %647 = vrot.lane.b32.xlu0 %v484, 15
      %v648 = vpop.permute.xlu0 %647
      %649 = vrot.lane.b32.xlu0 %v486, 15
      %v650 = vpop.permute.xlu0 %649
      %651 = vrot.lane.b32.xlu0 %v488, 15
      %v652 = vpop.permute.xlu0 %651
      %vm653 = vcmp.lt.s32.totalorder %v514, 15
      %v654 = vsel %vm653, %v638, %v646
      %v655 = vsel %vm653, %v640, %v648
      %v656 = vsel %vm653, %v642, %v650
      %v657 = vsel %vm653, %v644, %v652
      %v658 = vsel %vm653, %v646, %v638
      %v659 = vsel %vm653, %v648, %v640
      %v660 = vsel %vm653, %v650, %v642
      %v661 = vsel %vm653, %v652, %v644
      %v662 = vperm.slane %v493, 2
      %v663 = vperm.slane %v494, 2
      %v664 = vmul.f32 %v658, %v662
      %v665 = vmul.f32 %v654, %v663
      %v666 = vmul.f32 %v659, %v662
      %v667 = vmul.f32 %v655, %v663
      %v668 = vmul.f32 %v660, %v662
      %v669 = vmul.f32 %v656, %v663
      %v670 = vmul.f32 %v661, %v662
      %v671 = vmul.f32 %v657, %v663
      %672 = vset.pattern.permute.xlu0 2
      %673 = vperm.xlu0 %672, %v489
      %v674 = vpop.permute.xlu0 %673
      %676 = vset.pattern.permute.xlu0 2
      %677 = vperm.xlu0 %676, %v490
      %v678 = vpop.permute.xlu0 %677
      %680 = vset.pattern.permute.xlu0 2
      %681 = vperm.xlu0 %680, %v491
      %v682 = vpop.permute.xlu0 %681
      %684 = vset.pattern.permute.xlu0 2
      %685 = vperm.xlu0 %684, %v492
      %v686 = vpop.permute.xlu0 %685
      %v688 = vmul.f32 %v664, %v674
      %v689 = vmul.f32 %v665, %v674
      %v690 = vmul.f32 %v666, %v678
      %v691 = vmul.f32 %v667, %v678
      %v692 = vmul.f32 %v668, %v682
      %v693 = vmul.f32 %v669, %v682
      %v694 = vmul.f32 %v670, %v686
      %v695 = vmul.f32 %v671, %v686
      %v696 = vadd.f32 %v629, %v688
      %v697 = vadd.f32 %v630, %v689
      %v698 = vadd.f32 %v631, %v690
      %v699 = vadd.f32 %v632, %v691
      %v700 = vadd.f32 %v633, %v692
      %v701 = vadd.f32 %v634, %v693
      %v702 = vadd.f32 %v635, %v694
      %v703 = vadd.f32 %v636, %v695
      %704 = vrot.lane.b32.xlu0 %v481, 1
      %v705 = vpop.permute.xlu0 %704
      %706 = vrot.lane.b32.xlu0 %v483, 1
      %v707 = vpop.permute.xlu0 %706
      %708 = vrot.lane.b32.xlu0 %v485, 1
      %v709 = vpop.permute.xlu0 %708
      %710 = vrot.lane.b32.xlu0 %v487, 1
      %v711 = vpop.permute.xlu0 %710
      %712 = vrot.lane.b32.xlu0 %v482, 1
      %v713 = vpop.permute.xlu0 %712
      %714 = vrot.lane.b32.xlu0 %v484, 1
      %v715 = vpop.permute.xlu0 %714
      %716 = vrot.lane.b32.xlu0 %v486, 1
      %v717 = vpop.permute.xlu0 %716
      %718 = vrot.lane.b32.xlu0 %v488, 1
      %v719 = vpop.permute.xlu0 %718
      %vm720 = vcmp.lt.s32.totalorder %v514, 1
      %v721 = vsel %vm720, %v705, %v713
      %v722 = vsel %vm720, %v707, %v715
      %v723 = vsel %vm720, %v709, %v717
      %v724 = vsel %vm720, %v711, %v719
      %v725 = vsel %vm720, %v713, %v705
      %v726 = vsel %vm720, %v715, %v707
      %v727 = vsel %vm720, %v717, %v709
      %v728 = vsel %vm720, %v719, %v711
      %v729 = vperm.slane %v493, 3
      %v730 = vperm.slane %v494, 3
      %v731 = vmul.f32 %v725, %v729
      %v732 = vmul.f32 %v721, %v730
      %v733 = vmul.f32 %v726, %v729
      %v734 = vmul.f32 %v722, %v730
      %v735 = vmul.f32 %v727, %v729
      %v736 = vmul.f32 %v723, %v730
      %v737 = vmul.f32 %v728, %v729
      %v738 = vmul.f32 %v724, %v730
      %739 = vset.pattern.permute.xlu0 3
      %740 = vperm.xlu0 %739, %v489
      %v741 = vpop.permute.xlu0 %740
      %743 = vset.pattern.permute.xlu0 3
      %744 = vperm.xlu0 %743, %v490
      %v745 = vpop.permute.xlu0 %744
      %747 = vset.pattern.permute.xlu0 3
      %748 = vperm.xlu0 %747, %v491
      %v749 = vpop.permute.xlu0 %748
      %751 = vset.pattern.permute.xlu0 3
      %752 = vperm.xlu0 %751, %v492
      %v753 = vpop.permute.xlu0 %752
      %v755 = vmul.f32 %v731, %v741
      %v756 = vmul.f32 %v732, %v741
      %v757 = vmul.f32 %v733, %v745
      %v758 = vmul.f32 %v734, %v745
      %v759 = vmul.f32 %v735, %v749
      %v760 = vmul.f32 %v736, %v749
      %v761 = vmul.f32 %v737, %v753
      %v762 = vmul.f32 %v738, %v753
      %v763 = vadd.f32 %v696, %v755
      %v764 = vadd.f32 %v697, %v756
      %v765 = vadd.f32 %v698, %v757
      %v766 = vadd.f32 %v699, %v758
      %v767 = vadd.f32 %v700, %v759
      %v768 = vadd.f32 %v701, %v760
      %v769 = vadd.f32 %v702, %v761
      %v770 = vadd.f32 %v703, %v762
      %771 = vset.pattern.permute.xlu0 4
      %772 = vperm.xlu0 %771, %v489
      %v773 = vpop.permute.xlu0 %772
      %775 = vset.pattern.permute.xlu0 4
      %776 = vperm.xlu0 %775, %v490
      %v777 = vpop.permute.xlu0 %776
      %779 = vset.pattern.permute.xlu0 4
      %780 = vperm.xlu0 %779, %v491
      %v781 = vpop.permute.xlu0 %780
      %783 = vset.pattern.permute.xlu0 4
      %784 = vperm.xlu0 %783, %v492
      %v785 = vpop.permute.xlu0 %784
      %v787 = vmul.f32 %v481, %v773
      %v788 = vmul.f32 %v482, %v773
      %v789 = vmul.f32 %v483, %v777
      %v790 = vmul.f32 %v484, %v777
      %v791 = vmul.f32 %v485, %v781
      %v792 = vmul.f32 %v486, %v781
      %v793 = vmul.f32 %v487, %v785
      %v794 = vmul.f32 %v488, %v785
      %v795 = vadd.f32 %v763, %v787
      %v796 = vadd.f32 %v764, %v788
      %v797 = vadd.f32 %v765, %v789
      %v798 = vadd.f32 %v766, %v790
      %v799 = vadd.f32 %v767, %v791
      %v800 = vadd.f32 %v768, %v792
      %v801 = vadd.f32 %v769, %v793
      %v802 = vadd.f32 %v770, %v794
      %803 = vrot.lane.b32.xlu0 %v481, 127
      %v804 = vpop.permute.xlu0 %803
      %805 = vrot.lane.b32.xlu0 %v483, 127
      %v806 = vpop.permute.xlu0 %805
      %807 = vrot.lane.b32.xlu0 %v485, 127
      %v808 = vpop.permute.xlu0 %807
      %809 = vrot.lane.b32.xlu0 %v487, 127
      %v810 = vpop.permute.xlu0 %809
      %811 = vrot.lane.b32.xlu0 %v482, 127
      %v812 = vpop.permute.xlu0 %811
      %813 = vrot.lane.b32.xlu0 %v484, 127
      %v814 = vpop.permute.xlu0 %813
      %815 = vrot.lane.b32.xlu0 %v486, 127
      %v816 = vpop.permute.xlu0 %815
      %817 = vrot.lane.b32.xlu0 %v488, 127
      %v818 = vpop.permute.xlu0 %817
      %vm819 = vcmp.lt.s32.totalorder %v514, 127
      %v820 = vsel %vm819, %v804, %v812
      %v821 = vsel %vm819, %v806, %v814
      %v822 = vsel %vm819, %v808, %v816
      %v823 = vsel %vm819, %v810, %v818
      %v824 = vsel %vm819, %v812, %v804
      %v825 = vsel %vm819, %v814, %v806
      %v826 = vsel %vm819, %v816, %v808
      %v827 = vsel %vm819, %v818, %v810
      %v828 = vperm.slane %v493, 5
      %v829 = vperm.slane %v494, 5
      %v830 = vmul.f32 %v820, %v828
      %v831 = vmul.f32 %v824, %v829
      %v832 = vmul.f32 %v821, %v828
      %v833 = vmul.f32 %v825, %v829
      %v834 = vmul.f32 %v822, %v828
      %v835 = vmul.f32 %v826, %v829
      %v836 = vmul.f32 %v823, %v828
      %v837 = vmul.f32 %v827, %v829
      %838 = vset.pattern.permute.xlu0 5
      %839 = vperm.xlu0 %838, %v489
      %v840 = vpop.permute.xlu0 %839
      %842 = vset.pattern.permute.xlu0 5
      %843 = vperm.xlu0 %842, %v490
      %v844 = vpop.permute.xlu0 %843
      %846 = vset.pattern.permute.xlu0 5
      %847 = vperm.xlu0 %846, %v491
      %v848 = vpop.permute.xlu0 %847
      %850 = vset.pattern.permute.xlu0 5
      %851 = vperm.xlu0 %850, %v492
      %v852 = vpop.permute.xlu0 %851
      %v854 = vmul.f32 %v830, %v840
      %v855 = vmul.f32 %v831, %v840
      %v856 = vmul.f32 %v832, %v844
      %v857 = vmul.f32 %v833, %v844
      %v858 = vmul.f32 %v834, %v848
      %v859 = vmul.f32 %v835, %v848
      %v860 = vmul.f32 %v836, %v852
      %v861 = vmul.f32 %v837, %v852
      %v862 = vadd.f32 %v795, %v854
      %v863 = vadd.f32 %v796, %v855
      %v864 = vadd.f32 %v797, %v856
      %v865 = vadd.f32 %v798, %v857
      %v866 = vadd.f32 %v799, %v858
      %v867 = vadd.f32 %v800, %v859
      %v868 = vadd.f32 %v801, %v860
      %v869 = vadd.f32 %v802, %v861
      %870 = vrot.lane.b32.xlu0 %v481, 113
      %v871 = vpop.permute.xlu0 %870
      %872 = vrot.lane.b32.xlu0 %v483, 113
      %v873 = vpop.permute.xlu0 %872
      %874 = vrot.lane.b32.xlu0 %v485, 113
      %v875 = vpop.permute.xlu0 %874
      %876 = vrot.lane.b32.xlu0 %v487, 113
      %v877 = vpop.permute.xlu0 %876
      %878 = vrot.lane.b32.xlu0 %v482, 113
      %v879 = vpop.permute.xlu0 %878
      %880 = vrot.lane.b32.xlu0 %v484, 113
      %v881 = vpop.permute.xlu0 %880
      %882 = vrot.lane.b32.xlu0 %v486, 113
      %v883 = vpop.permute.xlu0 %882
      %884 = vrot.lane.b32.xlu0 %v488, 113
      %v885 = vpop.permute.xlu0 %884
      %vm886 = vcmp.lt.s32.totalorder %v514, 113
      %v887 = vsel %vm886, %v871, %v879
      %v888 = vsel %vm886, %v873, %v881
      %v889 = vsel %vm886, %v875, %v883
      %v890 = vsel %vm886, %v877, %v885
      %v891 = vsel %vm886, %v879, %v871
      %v892 = vsel %vm886, %v881, %v873
      %v893 = vsel %vm886, %v883, %v875
      %v894 = vsel %vm886, %v885, %v877
      %v895 = vperm.slane %v493, 6
      %v896 = vperm.slane %v494, 6
      %v897 = vmul.f32 %v887, %v895
      %v898 = vmul.f32 %v891, %v896
      %v899 = vmul.f32 %v888, %v895
      %v900 = vmul.f32 %v892, %v896
      %v901 = vmul.f32 %v889, %v895
      %v902 = vmul.f32 %v893, %v896
      %v903 = vmul.f32 %v890, %v895
      %v904 = vmul.f32 %v894, %v896
      %905 = vset.pattern.permute.xlu0 6
      %906 = vperm.xlu0 %905, %v489
      %v907 = vpop.permute.xlu0 %906
      %909 = vset.pattern.permute.xlu0 6
      %910 = vperm.xlu0 %909, %v490
      %v911 = vpop.permute.xlu0 %910
      %913 = vset.pattern.permute.xlu0 6
      %914 = vperm.xlu0 %913, %v491
      %v915 = vpop.permute.xlu0 %914
      %917 = vset.pattern.permute.xlu0 6
      %918 = vperm.xlu0 %917, %v492
      %v919 = vpop.permute.xlu0 %918
      %v921 = vmul.f32 %v897, %v907
      %v922 = vmul.f32 %v898, %v907
      %v923 = vmul.f32 %v899, %v911
      %v924 = vmul.f32 %v900, %v911
      %v925 = vmul.f32 %v901, %v915
      %v926 = vmul.f32 %v902, %v915
      %v927 = vmul.f32 %v903, %v919
      %v928 = vmul.f32 %v904, %v919
      %v929 = vadd.f32 %v862, %v921
      %v930 = vadd.f32 %v863, %v922
      %v931 = vadd.f32 %v864, %v923
      %v932 = vadd.f32 %v865, %v924
      %v933 = vadd.f32 %v866, %v925
      %v934 = vadd.f32 %v867, %v926
      %v935 = vadd.f32 %v868, %v927
      %v936 = vadd.f32 %v869, %v928
      %937 = vrot.lane.b32.xlu0 %v481, 112
      %v938 = vpop.permute.xlu0 %937
      %939 = vrot.lane.b32.xlu0 %v483, 112
      %v940 = vpop.permute.xlu0 %939
      %941 = vrot.lane.b32.xlu0 %v485, 112
      %v942 = vpop.permute.xlu0 %941
      %943 = vrot.lane.b32.xlu0 %v487, 112
      %v944 = vpop.permute.xlu0 %943
      %945 = vrot.lane.b32.xlu0 %v482, 112
      %v946 = vpop.permute.xlu0 %945
      %947 = vrot.lane.b32.xlu0 %v484, 112
      %v948 = vpop.permute.xlu0 %947
      %949 = vrot.lane.b32.xlu0 %v486, 112
      %v950 = vpop.permute.xlu0 %949
      %951 = vrot.lane.b32.xlu0 %v488, 112
      %v952 = vpop.permute.xlu0 %951
      %vm953 = vcmp.lt.s32.totalorder %v514, 112
      %v954 = vsel %vm953, %v938, %v946
      %v955 = vsel %vm953, %v940, %v948
      %v956 = vsel %vm953, %v942, %v950
      %v957 = vsel %vm953, %v944, %v952
      %v958 = vsel %vm953, %v946, %v938
      %v959 = vsel %vm953, %v948, %v940
      %v960 = vsel %vm953, %v950, %v942
      %v961 = vsel %vm953, %v952, %v944
      %v962 = vperm.slane %v493, 7
      %v963 = vperm.slane %v494, 7
      %v964 = vmul.f32 %v954, %v962
      %v965 = vmul.f32 %v958, %v963
      %v966 = vmul.f32 %v955, %v962
      %v967 = vmul.f32 %v959, %v963
      %v968 = vmul.f32 %v956, %v962
      %v969 = vmul.f32 %v960, %v963
      %v970 = vmul.f32 %v957, %v962
      %v971 = vmul.f32 %v961, %v963
      %972 = vset.pattern.permute.xlu0 7
      %973 = vperm.xlu0 %972, %v489
      %v974 = vpop.permute.xlu0 %973
      %976 = vset.pattern.permute.xlu0 7
      %977 = vperm.xlu0 %976, %v490
      %v978 = vpop.permute.xlu0 %977
      %980 = vset.pattern.permute.xlu0 7
      %981 = vperm.xlu0 %980, %v491
      %v982 = vpop.permute.xlu0 %981
      %984 = vset.pattern.permute.xlu0 7
      %985 = vperm.xlu0 %984, %v492
      %v986 = vpop.permute.xlu0 %985
      %v988 = vmul.f32 %v964, %v974
      %v989 = vmul.f32 %v965, %v974
      %v990 = vmul.f32 %v966, %v978
      %v991 = vmul.f32 %v967, %v978
      %v992 = vmul.f32 %v968, %v982
      %v993 = vmul.f32 %v969, %v982
      %v994 = vmul.f32 %v970, %v986
      %v995 = vmul.f32 %v971, %v986
      %v996 = vadd.f32 %v929, %v988
      %v997 = vadd.f32 %v930, %v989
      %v998 = vadd.f32 %v931, %v990
      %v999 = vadd.f32 %v932, %v991
      %v1000 = vadd.f32 %v933, %v992
      %v1001 = vadd.f32 %v934, %v993
      %v1002 = vadd.f32 %v935, %v994
      %v1003 = vadd.f32 %v936, %v995
      %1004 = vrot.lane.b32.xlu0 %v481, 111
      %v1005 = vpop.permute.xlu0 %1004
      %1006 = vrot.lane.b32.xlu0 %v483, 111
      %v1007 = vpop.permute.xlu0 %1006
      %1008 = vrot.lane.b32.xlu0 %v485, 111
      %v1009 = vpop.permute.xlu0 %1008
      %1010 = vrot.lane.b32.xlu0 %v487, 111
      %v1011 = vpop.permute.xlu0 %1010
      %1012 = vrot.lane.b32.xlu0 %v482, 111
      %v1013 = vpop.permute.xlu0 %1012
      %1014 = vrot.lane.b32.xlu0 %v484, 111
      %v1015 = vpop.permute.xlu0 %1014
      %1016 = vrot.lane.b32.xlu0 %v486, 111
      %v1017 = vpop.permute.xlu0 %1016
      %1018 = vrot.lane.b32.xlu0 %v488, 111
      %v1019 = vpop.permute.xlu0 %1018
      %vm1020 = vcmp.lt.s32.totalorder %v514, 111
      %v1021 = vsel %vm1020, %v1005, %v1013
      %v1022 = vsel %vm1020, %v1007, %v1015
      %v1023 = vsel %vm1020, %v1009, %v1017
      %v1024 = vsel %vm1020, %v1011, %v1019
      %v1025 = vsel %vm1020, %v1013, %v1005
      %v1026 = vsel %vm1020, %v1015, %v1007
      %v1027 = vsel %vm1020, %v1017, %v1009
      %v1028 = vsel %vm1020, %v1019, %v1011
      %v1029 = vperm.slane %v495, 0
      %v1030 = vperm.slane %v496, 0
      %v1031 = vmul.f32 %v1021, %v1029
      %v1032 = vmul.f32 %v1025, %v1030
      %v1033 = vmul.f32 %v1022, %v1029
      %v1034 = vmul.f32 %v1026, %v1030
      %v1035 = vmul.f32 %v1023, %v1029
      %v1036 = vmul.f32 %v1027, %v1030
      %v1037 = vmul.f32 %v1024, %v1029
      %v1038 = vmul.f32 %v1028, %v1030
      %1039 = vset.pattern.permute.xlu0 8
      %1040 = vperm.xlu0 %1039, %v489
      %v1041 = vpop.permute.xlu0 %1040
      %1043 = vset.pattern.permute.xlu0 8
      %1044 = vperm.xlu0 %1043, %v490
      %v1045 = vpop.permute.xlu0 %1044
      %1047 = vset.pattern.permute.xlu0 8
      %1048 = vperm.xlu0 %1047, %v491
      %v1049 = vpop.permute.xlu0 %1048
      %1051 = vset.pattern.permute.xlu0 8
      %1052 = vperm.xlu0 %1051, %v492
      %v1053 = vpop.permute.xlu0 %1052
      %v1055 = vmul.f32 %v1031, %v1041
      %v1056 = vmul.f32 %v1032, %v1041
      %v1057 = vmul.f32 %v1033, %v1045
      %v1058 = vmul.f32 %v1034, %v1045
      %v1059 = vmul.f32 %v1035, %v1049
      %v1060 = vmul.f32 %v1036, %v1049
      %v1061 = vmul.f32 %v1037, %v1053
      %v1062 = vmul.f32 %v1038, %v1053
      %v1063 = vadd.f32 %v996, %v1055
      %v1064 = vadd.f32 %v997, %v1056
      %v1065 = vadd.f32 %v998, %v1057
      %v1066 = vadd.f32 %v999, %v1058
      %v1067 = vadd.f32 %v1000, %v1059
      %v1068 = vadd.f32 %v1001, %v1060
      %v1069 = vadd.f32 %v1002, %v1061
      %v1070 = vadd.f32 %v1003, %v1062
      %v1071 = vld [vmem:[%s4] sm:$0xff]
      %v1072 = vld [vmem:[%s4 + $0x8] sm:$0xff]
      %v1073 = vld [vmem:[%s4 + $0x10] sm:$0xff]
      %v1074 = vld [vmem:[%s4 + $0x18] sm:$0xff]
      %1076 = vset.pattern.permute.xlu0 0
      %1077 = vperm.xlu0 %1076, %v1071
      %v1078 = vpop.permute.xlu0 %1077
      %1081 = vset.pattern.permute.xlu0 0
      %1082 = vperm.xlu0 %1081, %v1072
      %v1083 = vpop.permute.xlu0 %1082
      %1086 = vset.pattern.permute.xlu0 0
      %1087 = vperm.xlu0 %1086, %v1073
      %v1088 = vpop.permute.xlu0 %1087
      %1091 = vset.pattern.permute.xlu0 0
      %1092 = vperm.xlu0 %1091, %v1074
      %v1093 = vpop.permute.xlu0 %1092
      %v1095 = vadd.f32 %v1063, %v1078
      %v1096 = vadd.f32 %v1064, %v1078
      %v1097 = vadd.f32 %v1065, %v1083
      %v1098 = vadd.f32 %v1066, %v1083
      %v1099 = vadd.f32 %v1067, %v1088
      %v1100 = vadd.f32 %v1068, %v1088
      %v1101 = vadd.f32 %v1069, %v1093
      %v1102 = vadd.f32 %v1070, %v1093
      %v1103 = vadd.f32 %v1095, 3.0
      %v1104 = vadd.f32 %v1096, 3.0
      %v1105 = vadd.f32 %v1097, 3.0
      %v1106 = vadd.f32 %v1098, 3.0
      %v1107 = vadd.f32 %v1099, 3.0
      %v1108 = vadd.f32 %v1100, 3.0
      %v1109 = vadd.f32 %v1101, 3.0
      %v1110 = vadd.f32 %v1102, 3.0
      %v1111 = vmax.f32 %v1103, 0.0
      %v1112 = vmax.f32 %v1104, 0.0
      %v1113 = vmax.f32 %v1105, 0.0
      %v1114 = vmax.f32 %v1106, 0.0
      %v1115 = vmax.f32 %v1107, 0.0
      %v1116 = vmax.f32 %v1108, 0.0
      %v1117 = vmax.f32 %v1109, 0.0
      %v1118 = vmax.f32 %v1110, 0.0
      %v1119 = vmin.f32 %v1111, 6.0
      %v1120 = vmin.f32 %v1112, 6.0
      %v1121 = vmin.f32 %v1113, 6.0
      %v1122 = vmin.f32 %v1114, 6.0
      %v1123 = vmin.f32 %v1115, 6.0
      %v1124 = vmin.f32 %v1116, 6.0
      %v1125 = vmin.f32 %v1117, 6.0
      %v1126 = vmin.f32 %v1118, 6.0
      %v1127 = vmul.f32 %v1095, %v1119
      %v1128 = vmul.f32 %v1096, %v1120
      %v1129 = vmul.f32 %v1097, %v1121
      %v1130 = vmul.f32 %v1098, %v1122
      %v1131 = vmul.f32 %v1099, %v1123
      %v1132 = vmul.f32 %v1100, %v1124
      %v1133 = vmul.f32 %v1101, %v1125
      %v1134 = vmul.f32 %v1102, %v1126
      %v1135 = vld [vmem:[%s6] sm:$0xf]
      %v1136 = vpack.c.bf16 %v1129, %v1127
      %v1137 = vpack.c.bf16 %v1130, %v1128
      %v1138 = vpack.c.bf16 %v1133, %v1131
      %v1139 = vpack.c.bf16 %v1134, %v1132
      %v1140 = vld [vmem:[%s7] sm:$0xff]
      %1142 = vset.pattern.permute.xlu0 0
      %1143 = vperm.xlu0 %1142, %v1140
      %v1144 = vpop.permute.xlu0 %1143
      %vm1146 = vcmask 261120
      %v1148 = vsel %vm1146, %v1135, 0
      %1150 = vmatpush.bf16.msra.mxu0 0
      %1151 = vmatpush.bf16.msra.mxu0 0
      %1152 = vmatpush.bf16.msra.mxu0 0
      %1153 = vmatpush.bf16.msra.mxu0 0
      %1154 = vmatpush.bf16.msra.mxu0 0
      %1155 = vmatpush.bf16.msra.mxu0 0
      %1156 = vmatpush.bf16.msra.mxu0 %v1138
      %1157 = vmatpush.bf16.msra.mxu0 %v1136
      %1158 = vmatmul.bf16.gmra.mxu0 %v1148
      %v1159 = vpop.f32.mrf.mxu0
      %v1160 = vadd.f32 %v1144, %v1159
      %v1161 = vpop.f32.mrf.mxu0
      %1162 = vdwg.mxu0
      %1163 = vmatpush.bf16.msra.mxu0 0
      %1164 = vmatpush.bf16.msra.mxu0 0
      %1165 = vmatpush.bf16.msra.mxu0 0
      %1166 = vmatpush.bf16.msra.mxu0 0
      %1167 = vmatpush.bf16.msra.mxu0 0
      %1168 = vmatpush.bf16.msra.mxu0 0
      %1169 = vmatpush.bf16.msra.mxu0 %v1139
      %1170 = vmatpush.bf16.msra.mxu0 %v1137
      %1171 = vmatmul.bf16.gmra.mxu0 %v1148
      %v1172 = vpop.f32.mrf.mxu0
      %v1173 = vadd.f32 %v1144, %v1172
      %v1174 = vpop.f32.mrf.mxu0
      %1175 = vdwg.mxu0
      %v1176 = vmax.f32 %v1160, 0.0
      %v1177 = vmax.f32 %v1173, 0.0
      %v1178 = vld [vmem:[%s8] sm:$0xf]
      %v1179 = vpack.c.bf16 %v1176, %v1176
      %v1180 = vpack.c.bf16 %v1177, %v1177
      %v1181 = vld [vmem:[%s9] sm:$0xff]
      %1183 = vset.pattern.permute.xlu0 0
      %1184 = vperm.xlu0 %1183, %v1181
      %v1185 = vpop.permute.xlu0 %1184
      %v1188 = vsel %vm405, %v1178, 0
      %v1191 = vsel %vm412, %v1179, 0
      %v1194 = vsel %vm412, %v1180, 0
      %1196 = vmatpush.bf16.msra.mxu0 0
      %1197 = vmatpush.bf16.msra.mxu0 0
      %1198 = vmatpush.bf16.msra.mxu0 0
      %1199 = vmatpush.bf16.msra.mxu0 0
      %1200 = vmatpush.bf16.msra.mxu0 0
      %1201 = vmatpush.bf16.msra.mxu0 0
      %1202 = vmatpush.bf16.msra.mxu0 0
      %1203 = vmatpush.bf16.msra.mxu0 %v1191
      %1204 = vmatmul.bf16.gmra.mxu0 %v1188
      %v1205 = vpop.f32.mrf.mxu0
      %v1206 = vadd.f32 %v1185, %v1205
      %v1207 = vpop.f32.mrf.mxu0
      %1208 = vdwg.mxu0
      %1209 = vmatpush.bf16.msra.mxu0 0
      %1210 = vmatpush.bf16.msra.mxu0 0
      %1211 = vmatpush.bf16.msra.mxu0 0
      %1212 = vmatpush.bf16.msra.mxu0 0
      %1213 = vmatpush.bf16.msra.mxu0 0
      %1214 = vmatpush.bf16.msra.mxu0 0
      %1215 = vmatpush.bf16.msra.mxu0 0
      %1216 = vmatpush.bf16.msra.mxu0 %v1194
      %1217 = vmatmul.bf16.gmra.mxu0 %v1188
      %v1218 = vpop.f32.mrf.mxu0
      %v1219 = vadd.f32 %v1185, %v1218
      %v1220 = vpop.f32.mrf.mxu0
      %1221 = vdwg.mxu0
      %1222 = vst [vmem:[%s359] sm:$0xff] %v1206
      %1223 = vst [vmem:[%s359 + $0x8] sm:$0xff] %v1219
      %p1224 = scmp.lt.s32.totalorder %s21, 1
      %s1225 = scalar_select %p1224, %s21, 1
      %s1226 = smul.addr %s1225, 2
      %s1227 = smul.addr %s1226, 8
      %s1228 = scalar_lea.vmem %s10, %s1227
      // Predicated region
      $region61: #{inverted_residual.1} parent=59 // pred_check
        %p1229 = pneg %p254
      $region62: #{inverted_residual.1} parent=59 // pred_check_branch
        %1231 = sbr.rel (%p1229) target = $region64
      $region63: #{inverted_residual.1} parent=59 // pred_region
        _
      $region64: #{inverted_residual.1} parent=59 // pred_fallthru
        _
    $region60: #{inverted_residual.1} parent=5 // pred_fallthru
      _
    %p1232 = scmp.le.s32.totalorder 2, %s16
    // Predicated region
    $region65: #{inverted_residual.1} parent=5 // pred_check
      %p1233 = pneg %p1232
    $region66: #{inverted_residual.1} parent=5 // pred_check_branch
      %1235 = sbr.rel (%p1233) target = $region68
    $region67: #{inverted_residual.1} parent=5 // pred_region
      %s1236 = ssub.s32 %s16, 2
      // Predicated region
      $region69: #{inverted_residual.1} parent=67 // pred_check
        %p1237 = pneg %p260
      $region70: #{inverted_residual.1} parent=67 // pred_check_branch
        %1239 = sbr.rel (%p1237) target = $region72
      $region71: #{inverted_residual.1} parent=67 // pred_region
        %p1240 = scmp.lt.s32.totalorder %s22, 1
        %s1241 = scalar_select %p1240, %s22, 1
        %s1242 = smul.addr %s1241, 2
        %s1243 = smul.addr %s1242, 8
        %s1244 = scalar_lea.vmem %s10, %s1243
      $region72: #{inverted_residual.1} parent=67 // pred_fallthru
        _
    $region68: #{inverted_residual.1} parent=5 // pred_fallthru
      _
  $region6: #{inverted_residual.1} parent=0 // loop_footer
    %s20 = sadd.s32 1, %s16
  $region7: #{inverted_residual.1} parent=0 // loop_footer_branch
    %15 = sbr.rel target = $region3
  $region8: #{inverted_residual.1} parent=0 // loop_exit
    _

</llo_original>
